<compile_context>
chip_gen: v5e
topology: v5e:2x2
jax: 0.10.0
libtpu: 0.0.40
codegen_flags: <defaults>
</compile_context>

<pallas_src>
import functools

import jax
import jax.numpy as jnp
from jax.experimental import pallas as pl
from jax.experimental.pallas import tpu as pltpu

LANE = 128       # vreg lane width
SUBLANE = 8      # vreg sublane count (f32)
NEG_BIG = -1e30  # f32 bias for padded action lanes -> softmax weight 0


def _round_up(n, m):
    return ((n + m - 1) // m) * m


def _cdiv(a, b):
    return (a + b - 1) // b


def actor_kernel(x_ref, w1_ref, b1_ref, w2_ref, b2_ref, w3_ref, b3_ref, o_ref):
    # fc1 + relu  (x is f32 in HBM/VMEM; cast to bf16 for the MXU, accumulate f32)
    x = x_ref[...].astype(w1_ref.dtype)
    h1 = jnp.dot(x, w1_ref[...], preferred_element_type=jnp.float32)
    h1 = jnp.maximum(h1 + b1_ref[...], 0.0)
    # fc2 + relu
    h2 = jnp.dot(h1.astype(w2_ref.dtype), w2_ref[...],
                 preferred_element_type=jnp.float32)
    h2 = jnp.maximum(h2 + b2_ref[...], 0.0)
    # fc3 (+ bias).  Padded action lanes have bias = -1e30, so exp() -> 0 and
    # the 128-lane softmax equals the logical A-lane softmax.
    logits = jnp.dot(h2.astype(w3_ref.dtype), w3_ref[...],
                     preferred_element_type=jnp.float32)
    logits = logits + b3_ref[...]
    # Numerically stable softmax over the lane-dense slab; exact divide (the
    # kernel is memory-bound, so exact normalization costs nothing).
    m = jnp.max(logits, axis=-1, keepdims=True)
    e = jnp.exp(logits - m)
    denom = jnp.sum(e, axis=-1, keepdims=True)
    o_ref[...] = (e / denom).astype(o_ref.dtype)


def init_params(key, state_size, hidden_size, action_size):
    # Deterministic init mimicking nn.Linear default (uniform +-1/sqrt(fan_in)).
    ks = jax.random.split(key, 6)

    def linear(kw, kb, fan_in, fan_out):
        bound = 1.0 / jnp.sqrt(fan_in)
        # stored as [in, out] (transposed relative to torch's [out, in])
        w = jax.random.uniform(kw, (fan_in, fan_out), jnp.float32, -bound, bound)
        b = jax.random.uniform(kb, (fan_out,), jnp.float32, -bound, bound)
        return w, b

    w1, b1 = linear(ks[0], ks[1], state_size, hidden_size)
    w2, b2 = linear(ks[2], ks[3], hidden_size, hidden_size)
    w3, b3 = linear(ks[4], ks[5], hidden_size, action_size)
    return (w1, b1, w2, b2, w3, b3)


def prepare_params(raw_params, compute_dtype=jnp.bfloat16):
    """Pad hidden/action dims to 128 lanes; cast weights to bf16.

    The state dim of w1 is left unpadded (x is loaded at its logical width).
    Biases stay f32 (added after f32 accumulation).  The padded lanes of b3
    are set to -1e30 so the padded logits drop out of the softmax -- this
    requires the biases to remain a wide-range float dtype (f32/bf16, NOT fp8).
    """
    w1, b1, w2, b2, w3, b3 = raw_params
    S, H = w1.shape
    A = w3.shape[1]
    Hp, Ap = _round_up(H, LANE), _round_up(A, LANE)

    def pad_w(w, rp, cp):
        return jnp.pad(w, ((0, rp - w.shape[0]),
                           (0, cp - w.shape[1]))).astype(compute_dtype)

    def pad_b(b, cp, fill=0.0):
        bp = jnp.pad(b.reshape(1, -1), ((0, 0), (0, cp - b.shape[-1])),
                     constant_values=fill).astype(jnp.float32)
        assert bp.dtype == jnp.float32  # -1e30 padded-lane trick needs f32 range
        return bp

    return (pad_w(w1, S, Hp), pad_b(b1, Hp),       # state dim unpadded
            pad_w(w2, Hp, Hp), pad_b(b2, Hp),
            pad_w(w3, Hp, Ap), pad_b(b3, Ap, fill=NEG_BIG))


@functools.partial(jax.jit, static_argnames=("action_size", "block_batch"))
def actor_forward(x, padded_params, *, action_size, block_batch=2048):
    w1, b1, w2, b2, w3, b3 = padded_params
    B, S = x.shape
    Hp = w1.shape[1]
    Ap = w3.shape[1]

    # ---- Batch tiling ------------------------------------------------------
    # Large tiles amortize the ~0.35us per-grid-step overhead; cap so that
    # large batches split into >= 2 grid steps (v7x megacore), then rebalance
    # the tile to minimize batch padding.
    B8 = _round_up(B, SUBLANE)
    TB0 = min(block_batch, B8)
    if B8 >= 2 * SUBLANE:
        TB0 = min(TB0, _round_up(_cdiv(B8, 2), SUBLANE))
    TB0 = max(TB0, SUBLANE)
    nb = _cdiv(B8, TB0)
    TB = _round_up(_cdiv(B8, nb), SUBLANE)
    Bp = nb * TB

    # x stays f32 and unpadded in the state dim; only the batch dim is padded
    # (if needed) so the grid divides evenly.
    xp = x if Bp == B else jnp.pad(x, ((0, Bp - B), (0, 0)))

    def resident(shape):
        # weights/biases: same block every grid step -> stay VMEM-resident.
        return pl.BlockSpec(shape, lambda i: (0, 0))

    # Advisory cost estimate so XLA schedules the surrounding slice/cast ops
    # sensibly around the kernel.
    flops = 2 * Bp * (S * Hp + Hp * Hp + Hp * Ap)
    bytes_accessed = (xp.size * 4 + Bp * Ap * 2 +
                      (w1.size + w2.size + w3.size) * 2 +
                      (b1.size + b2.size + b3.size) * 4)
    cost = pl.CostEstimate(flops=flops, transcendentals=Bp * Ap,
                           bytes_accessed=bytes_accessed)

    out = pl.pallas_call(
        actor_kernel,
        out_shape=jax.ShapeDtypeStruct((Bp, Ap), jnp.bfloat16),
        grid_spec=pltpu.PrefetchScalarGridSpec(
            num_scalar_prefetch=0,
            grid=(nb,),
            in_specs=[
                # (TB, S): last dim equals the full array dim -> exempt from
                # the (8,128) rule; no state-dim padding, minimal x DMA bytes.
                pl.BlockSpec((TB, S), lambda i: (i, 0)),
                resident(w1.shape), resident(b1.shape),
                resident(w2.shape), resident(b2.shape),
                resident(w3.shape), resident(b3.shape),
            ],
            out_specs=pl.BlockSpec((TB, Ap), lambda i: (i, 0)),
        ),
        compiler_params=pltpu.CompilerParams(
            dimension_semantics=("parallel",),
            # Explicit scoped-VMEM budget: fits v5e (16 MiB default scoped),
            # v6e and v7x (32 MiB scoped / 64 MiB physical) at TB<=4096.
            vmem_limit_bytes=32 * 1024 * 1024,
        ),
        cost_estimate=cost,
    )(xp, w1, b1, w2, b2, w3, b3)

    # Drop batch padding and the (probability ~0) padded action lanes; return
    # f32 to match the torch module's output dtype.
    return out[:B, :action_size].astype(jnp.float32)


def reference_forward(x, raw_params):
    # Mirrors the kernel's dtype handling (bf16 MXU inputs, f32 accumulation).
    w1, b1, w2, b2, w3, b3 = raw_params
    bf = jnp.bfloat16
    h1 = jnp.dot(x.astype(bf), w1.astype(bf),
                 preferred_element_type=jnp.float32) + b1
    h1 = jnp.maximum(h1, 0.0)
    h2 = jnp.dot(h1.astype(bf), w2.astype(bf),
                 preferred_element_type=jnp.float32) + b2
    h2 = jnp.maximum(h2, 0.0)
    logits = jnp.dot(h2.astype(bf), w3.astype(bf),
                     preferred_element_type=jnp.float32) + b3
    return jax.nn.softmax(logits, axis=-1)


if __name__ == "__main__":
    state_size, hidden_size, action_size = 16, 32, 8
    batch = 8

    key = jax.random.PRNGKey(0)
    k_x, k_p = jax.random.split(key)
    x = jax.random.normal(k_x, (batch, state_size), jnp.float32)

    raw_params = init_params(k_p, state_size, hidden_size, action_size)
    padded_params = prepare_params(raw_params)

    out = actor_forward(x, padded_params, action_size=action_size)
    jax.block_until_ready(out)

    ref = reference_forward(x, raw_params)
    assert out.shape == (batch, action_size)
    err = float(jnp.max(jnp.abs(out - ref)))
    # bf16 output store + bf16 MXU inputs -> ~5e-3 tolerance vs f32 softmax
    assert jnp.allclose(out, ref, atol=5e-3, rtol=0.0), f"max abs err {err}"
    # rows sum to 1 (exact-divide softmax, bf16 store rounding only)
    assert jnp.allclose(jnp.sum(out, axis=-1), jnp.ones(batch), atol=5e-3)

    print("KERNEL_OK")
</pallas_src>

<mosaic_0001>
module attributes {stable_mosaic.version = 11 : i64} {
  func.func @actor_kernel(%arg0: i32, %arg1: memref<8x16xf32, #tpu.memory_space<vmem>>, %arg2: memref<16x128xbf16, #tpu.memory_space<vmem>>, %arg3: memref<1x128xf32, #tpu.memory_space<vmem>>, %arg4: memref<128x128xbf16, #tpu.memory_space<vmem>>, %arg5: memref<1x128xf32, #tpu.memory_space<vmem>>, %arg6: memref<128x128xbf16, #tpu.memory_space<vmem>>, %arg7: memref<1x128xf32, #tpu.memory_space<vmem>>, %arg8: memref<8x128xbf16, #tpu.memory_space<vmem>>) attributes {dimension_semantics = [#tpu.dimension_semantics<parallel>], iteration_bounds = array<i64: 1>, scalar_prefetch = 0 : i64, scratch_operands = 0 : i64, tpu.core_type = #tpu.core_type<tc>, window_params = [{transform_indices = @transform_0, window_bounds = array<i64: 8, 16>}, {pipeline_mode = #tpu.pipeline_mode<synchronous>, transform_indices = @transform_1, window_bounds = array<i64: 16, 128>}, {pipeline_mode = #tpu.pipeline_mode<synchronous>, transform_indices = @transform_2, window_bounds = array<i64: 1, 128>}, {pipeline_mode = #tpu.pipeline_mode<synchronous>, transform_indices = @transform_3, window_bounds = array<i64: 128, 128>}, {pipeline_mode = #tpu.pipeline_mode<synchronous>, transform_indices = @transform_4, window_bounds = array<i64: 1, 128>}, {pipeline_mode = #tpu.pipeline_mode<synchronous>, transform_indices = @transform_5, window_bounds = array<i64: 128, 128>}, {pipeline_mode = #tpu.pipeline_mode<synchronous>, transform_indices = @transform_6, window_bounds = array<i64: 1, 128>}, {transform_indices = @transform_7, window_bounds = array<i64: 8, 128>}]} {
    %c0 = arith.constant 0 : index
    %c0_0 = arith.constant 0 : index
    %0 = vector.load %arg1[%c0, %c0_0] : memref<8x16xf32, #tpu.memory_space<vmem>>, vector<8x16xf32>
    %1 = arith.truncf %0 : vector<8x16xf32> to vector<8x16xbf16>
    %c0_1 = arith.constant 0 : index
    %c0_2 = arith.constant 0 : index
    %2 = vector.load %arg2[%c0_1, %c0_2] : memref<16x128xbf16, #tpu.memory_space<vmem>>, vector<16x128xbf16>
    %cst = arith.constant dense<0.000000e+00> : vector<8x128xf32>
    %3 = tpu.matmul %1, %2, %cst {dimension_numbers = #tpu.dot_dimension_numbers<[1], [0], [0], [1], [0, 0, 1, 1], [], []>} : vector<8x16xbf16>, vector<16x128xbf16>, vector<8x128xf32> -> vector<8x128xf32>
    %c0_3 = arith.constant 0 : index
    %c0_4 = arith.constant 0 : index
    %4 = vector.load %arg3[%c0_3, %c0_4] : memref<1x128xf32, #tpu.memory_space<vmem>>, vector<1x128xf32>
    %5 = vector.broadcast %4 : vector<1x128xf32> to vector<8x128xf32>
    %6 = arith.addf %3, %5 : vector<8x128xf32>
    %cst_5 = arith.constant 0.000000e+00 : f32
    %7 = vector.broadcast %cst_5 : f32 to vector<8x128xf32>
    %8 = arith.maximumf %6, %7 : vector<8x128xf32>
    %9 = arith.truncf %8 : vector<8x128xf32> to vector<8x128xbf16>
    %c0_6 = arith.constant 0 : index
    %c0_7 = arith.constant 0 : index
    %10 = vector.load %arg4[%c0_6, %c0_7] : memref<128x128xbf16, #tpu.memory_space<vmem>>, vector<128x128xbf16>
    %cst_8 = arith.constant dense<0.000000e+00> : vector<8x128xf32>
    %11 = tpu.matmul %9, %10, %cst_8 {dimension_numbers = #tpu.dot_dimension_numbers<[1], [0], [0], [1], [0, 0, 1, 1], [], []>} : vector<8x128xbf16>, vector<128x128xbf16>, vector<8x128xf32> -> vector<8x128xf32>
    %c0_9 = arith.constant 0 : index
    %c0_10 = arith.constant 0 : index
    %12 = vector.load %arg5[%c0_9, %c0_10] : memref<1x128xf32, #tpu.memory_space<vmem>>, vector<1x128xf32>
    %13 = vector.broadcast %12 : vector<1x128xf32> to vector<8x128xf32>
    %14 = arith.addf %11, %13 : vector<8x128xf32>
    %cst_11 = arith.constant 0.000000e+00 : f32
    %15 = vector.broadcast %cst_11 : f32 to vector<8x128xf32>
    %16 = arith.maximumf %14, %15 : vector<8x128xf32>
    %17 = arith.truncf %16 : vector<8x128xf32> to vector<8x128xbf16>
    %c0_12 = arith.constant 0 : index
    %c0_13 = arith.constant 0 : index
    %18 = vector.load %arg6[%c0_12, %c0_13] : memref<128x128xbf16, #tpu.memory_space<vmem>>, vector<128x128xbf16>
    %cst_14 = arith.constant dense<0.000000e+00> : vector<8x128xf32>
    %19 = tpu.matmul %17, %18, %cst_14 {dimension_numbers = #tpu.dot_dimension_numbers<[1], [0], [0], [1], [0, 0, 1, 1], [], []>} : vector<8x128xbf16>, vector<128x128xbf16>, vector<8x128xf32> -> vector<8x128xf32>
    %c0_15 = arith.constant 0 : index
    %c0_16 = arith.constant 0 : index
    %20 = vector.load %arg7[%c0_15, %c0_16] : memref<1x128xf32, #tpu.memory_space<vmem>>, vector<1x128xf32>
    %21 = vector.broadcast %20 : vector<1x128xf32> to vector<8x128xf32>
    %22 = arith.addf %19, %21 : vector<8x128xf32>
    %cst_17 = arith.constant dense<0xFF800000> : vector<8xf32>
    %23 = vector.multi_reduction <maximumf>, %22, %cst_17 [1] : vector<8x128xf32> to vector<8xf32>
    %24 = vector.shape_cast %23 : vector<8xf32> to vector<8x1xf32>
    %25 = vector.broadcast %24 : vector<8x1xf32> to vector<8x128xf32>
    %26 = arith.subf %22, %25 : vector<8x128xf32>
    %27 = math.exp %26 : vector<8x128xf32>
    %cst_18 = arith.constant dense<0.000000e+00> : vector<8xf32>
    %28 = vector.multi_reduction <add>, %27, %cst_18 [1] : vector<8x128xf32> to vector<8xf32>
    %29 = vector.shape_cast %28 : vector<8xf32> to vector<8x1xf32>
    %30 = vector.broadcast %29 : vector<8x1xf32> to vector<8x128xf32>
    %31 = arith.divf %27, %30 : vector<8x128xf32>
    %32 = arith.truncf %31 : vector<8x128xf32> to vector<8x128xbf16>
    %c0_19 = arith.constant 0 : index
    %c0_20 = arith.constant 0 : index
    %33 = vector.load %arg8[%c0_19, %c0_20] : memref<8x128xbf16, #tpu.memory_space<vmem>>, vector<8x128xbf16>
    tpu.vector_store %arg8[%c0_19, %c0_20], %32 {strides = array<i32>} : memref<8x128xbf16, #tpu.memory_space<vmem>>, vector<8x128xbf16>,
    return
  }
  func.func @transform_0(%arg0: i32) -> (i32, i32) {
    %c0_i32 = arith.constant 0 : i32
    %c0_i32_0 = arith.constant 0 : i32
    return %arg0, %c0_i32 : i32, i32
  }
  func.func @transform_1(%arg0: i32) -> (i32, i32) {
    %c0_i32 = arith.constant 0 : i32
    %c0_i32_0 = arith.constant 0 : i32
    %c0_i32_1 = arith.constant 0 : i32
    return %c0_i32, %c0_i32_0 : i32, i32
  }
  func.func @transform_2(%arg0: i32) -> (i32, i32) {
    %c0_i32 = arith.constant 0 : i32
    %c0_i32_0 = arith.constant 0 : i32
    %c0_i32_1 = arith.constant 0 : i32
    return %c0_i32, %c0_i32_0 : i32, i32
  }
  func.func @transform_3(%arg0: i32) -> (i32, i32) {
    %c0_i32 = arith.constant 0 : i32
    %c0_i32_0 = arith.constant 0 : i32
    %c0_i32_1 = arith.constant 0 : i32
    return %c0_i32, %c0_i32_0 : i32, i32
  }
  func.func @transform_4(%arg0: i32) -> (i32, i32) {
    %c0_i32 = arith.constant 0 : i32
    %c0_i32_0 = arith.constant 0 : i32
    %c0_i32_1 = arith.constant 0 : i32
    return %c0_i32, %c0_i32_0 : i32, i32
  }
  func.func @transform_5(%arg0: i32) -> (i32, i32) {
    %c0_i32 = arith.constant 0 : i32
    %c0_i32_0 = arith.constant 0 : i32
    %c0_i32_1 = arith.constant 0 : i32
    return %c0_i32, %c0_i32_0 : i32, i32
  }
  func.func @transform_6(%arg0: i32) -> (i32, i32) {
    %c0_i32 = arith.constant 0 : i32
    %c0_i32_0 = arith.constant 0 : i32
    %c0_i32_1 = arith.constant 0 : i32
    return %c0_i32, %c0_i32_0 : i32, i32
  }
  func.func @transform_7(%arg0: i32) -> (i32, i32) {
    %c0_i32 = arith.constant 0 : i32
    %c0_i32_0 = arith.constant 0 : i32
    return %arg0, %c0_i32 : i32, i32
  }
}

</mosaic_0001>

<llo_original>
// kernel: actor_forward.1
$region0: #{actor_forward.1}
  #allocation0 [shape = 'u32[]', space=smem, size = 0x4, offset = 0x4, fixed_abs, tag = 'smem constant byte address 0x4 - core index']
  #allocation1 [shape = 'u32[72,128]{1,0:T(1,128)}', space=vmem, size = 0x9000, scoped, tag = 'internal scratch']
  %s0 = inlined_call_operand.hbm [shape: f32[8,16], index: 0, kind: input, shape index: {}]
  %s1 = inlined_call_operand.hbm [shape: bf16[16,128], index: 1, kind: input, shape index: {}]
  %s2 = inlined_call_operand.vmem [shape: f32[1,128], index: 2, kind: input, shape index: {}]
  %s3 = inlined_call_operand.hbm [shape: bf16[128,128], index: 3, kind: input, shape index: {}]
  %s4 = inlined_call_operand.vmem [shape: f32[1,128], index: 4, kind: input, shape index: {}]
  %s5 = inlined_call_operand.hbm [shape: bf16[128,128], index: 5, kind: input, shape index: {}]
  %s6 = inlined_call_operand.vmem [shape: f32[1,128], index: 6, kind: input, shape index: {}]
  %s7 = inlined_call_operand.vmem [shape: bf16[8,128], index: 7, kind: output, shape index: {}]
  %s8 = sld [smem:[#allocation0]]
  $region54: #{actor_forward.1} parent=0
    _
  %s10 = ssub.s32 1, %s8
  %s11 = scalar_select 0, %s10, %s8
  $region1: #{actor_forward.1} parent=0
    #allocation2 [shape = 'u8[4096]{0}', space=vmem, size = 0x1000, scoped, tag = 'input window, operand 0, single buffered']
    #allocation3 [shape = 's32[1]{0}', space=sflag, size = 0x4, scoped, tag = 'scoped memory for actor_forward.1']
    #allocation4 [shape = 'u8[4096]{0}', space=vmem, size = 0x1000, scoped, tag = 'input window, operand 1, single buffered']
    #allocation5 [shape = 's32[1]{0}', space=sflag, size = 0x4, scoped, tag = 'scoped memory for actor_forward.1']
    #allocation6 [shape = 'u8[32768]{0}', space=vmem, size = 0x8000, scoped, tag = 'input window, operand 3, single buffered']
    #allocation7 [shape = 'u8[32768]{0}', space=vmem, size = 0x8000, scoped, tag = 'input window, operand 5, single buffered']
    #allocation8 [shape = 's32[1]{0}', space=sflag, size = 0x4, scoped, tag = 'scoped memory for actor_forward.1']
    %12 = vsyncpa [#allocation3], 0
    %13 = vsyncpa [#allocation5], 0
    %14 = vsyncpa [#allocation8], 0
    // Predicated region
    $region2: #{actor_forward.1} parent=1 // pred_check
      _
    $region3: #{actor_forward.1} parent=1 // pred_check_branch
      %16 = sbr.rel (0) target = $region5
    $region4: #{actor_forward.1} parent=1 // pred_region
      %18 = vsyncadd [#allocation3], 0
      %s20 = sshll.u32 %s0, 4
      %s21 = int_to_ptr.hbm [resolvable:$true] %s20
      %s22 = sshll.u32 [#allocation2], 4
      %s23 = int_to_ptr.vmem [resolvable:$true] %s22
      %25 = dma.hbm_to_vmem [thread:$0]  %s21, 128, %s23, [#allocation3]
    $region5: #{actor_forward.1} parent=1 // pred_fallthru
      _
    // Predicated region
    $region6: #{actor_forward.1} parent=1 // pred_check
      _
    $region7: #{actor_forward.1} parent=1 // pred_check_branch
      %27 = sbr.rel (0) target = $region9
    $region8: #{actor_forward.1} parent=1 // pred_region
      %29 = vsyncadd [#allocation5], 0
      %s30 = sshll.u32 %s1, 4
      %s31 = int_to_ptr.hbm [resolvable:$true] %s30
      %s32 = sshll.u32 [#allocation4], 4
      %s33 = int_to_ptr.vmem [resolvable:$true] %s32
      %38 = dma.hbm_to_vmem [thread:$0]  %s31, 128, %s33, [#allocation5], 64, 64, 4
    $region9: #{actor_forward.1} parent=1 // pred_fallthru
      _
    // Predicated region
    $region10: #{actor_forward.1} parent=1 // pred_check
      _
    $region11: #{actor_forward.1} parent=1 // pred_check_branch
      %40 = sbr.rel (0) target = $region13
    $region12: #{actor_forward.1} parent=1 // pred_region
      _
    $region13: #{actor_forward.1} parent=1 // pred_fallthru
      _
    // Predicated region
    $region14: #{actor_forward.1} parent=1 // pred_check
      _
    $region15: #{actor_forward.1} parent=1 // pred_check_branch
      %42 = sbr.rel (0) target = $region17
    $region16: #{actor_forward.1} parent=1 // pred_region
      %44 = vsyncadd [#allocation5], 0
      %s45 = sshll.u32 %s3, 4
      %s46 = int_to_ptr.hbm [resolvable:$true] %s45
      %s47 = sshll.u32 [#allocation6], 4
      %s48 = int_to_ptr.vmem [resolvable:$true] %s47
      %53 = dma.hbm_to_vmem [thread:$0]  %s46, 1024, %s48, [#allocation5], 64, 64, 4
    $region17: #{actor_forward.1} parent=1 // pred_fallthru
      _
    // Predicated region
    $region18: #{actor_forward.1} parent=1 // pred_check
      _
    $region19: #{actor_forward.1} parent=1 // pred_check_branch
      %55 = sbr.rel (0) target = $region21
    $region20: #{actor_forward.1} parent=1 // pred_region
      _
    $region21: #{actor_forward.1} parent=1 // pred_fallthru
      _
    // Predicated region
    $region22: #{actor_forward.1} parent=1 // pred_check
      _
    $region23: #{actor_forward.1} parent=1 // pred_check_branch
      %57 = sbr.rel (0) target = $region25
    $region24: #{actor_forward.1} parent=1 // pred_region
      %59 = vsyncadd [#allocation8], 0
      %s60 = sshll.u32 %s5, 4
      %s61 = int_to_ptr.hbm [resolvable:$true] %s60
      %s62 = sshll.u32 [#allocation7], 4
      %s63 = int_to_ptr.vmem [resolvable:$true] %s62
      %68 = dma.hbm_to_vmem [thread:$0]  %s61, 1024, %s63, [#allocation8], 64, 64, 4
    $region25: #{actor_forward.1} parent=1 // pred_fallthru
      _
    // Predicated region
    $region26: #{actor_forward.1} parent=1 // pred_check
      _
    $region27: #{actor_forward.1} parent=1 // pred_check_branch
      %70 = sbr.rel (0) target = $region29
    $region28: #{actor_forward.1} parent=1 // pred_region
      _
    $region29: #{actor_forward.1} parent=1 // pred_fallthru
      _
    // Predicated region
    $region30: #{actor_forward.1} parent=1 // pred_check
      _
    $region31: #{actor_forward.1} parent=1 // pred_check_branch
      %72 = sbr.rel (0) target = $region33
    $region32: #{actor_forward.1} parent=1 // pred_region
      %74 = dma.done [#allocation3], 128
    $region33: #{actor_forward.1} parent=1 // pred_fallthru
      _
    // Predicated region
    $region34: #{actor_forward.1} parent=1 // pred_check
      _
    $region35: #{actor_forward.1} parent=1 // pred_check_branch
      %76 = sbr.rel (0) target = $region37
    $region36: #{actor_forward.1} parent=1 // pred_region
      %78 = dma.done [#allocation5], 128
    $region37: #{actor_forward.1} parent=1 // pred_fallthru
      _
    // Predicated region
    $region38: #{actor_forward.1} parent=1 // pred_check
      _
    $region39: #{actor_forward.1} parent=1 // pred_check_branch
      %80 = sbr.rel (0) target = $region41
    $region40: #{actor_forward.1} parent=1 // pred_region
      %82 = dma.done [#allocation5], 1024
    $region41: #{actor_forward.1} parent=1 // pred_fallthru
      _
    // Predicated region
    $region42: #{actor_forward.1} parent=1 // pred_check
      _
    $region43: #{actor_forward.1} parent=1 // pred_check_branch
      %84 = sbr.rel (0) target = $region45
    $region44: #{actor_forward.1} parent=1 // pred_region
      %86 = dma.done [#allocation8], 1024
    $region45: #{actor_forward.1} parent=1 // pred_fallthru
      _
    %v88 = vld [vmem:[#allocation2] sm:$0xff]
    %v89 = vpack.c.bf16 %v88, %v88
    %v90 = vld [vmem:[#allocation4] sm:$0xf]
    %v91 = vld [vmem:[#allocation4 + $0x4] sm:$0xf]
    %v92 = vld [vmem:[%s2] sm:$0x1]
    %v94 = vperm.slane %v92, 0
    %v98 = vunpack.c.l.b16 %v90
    %v99 = vunpack.c.l.b16 %v91
    %v100 = vpack.c.b16 %v99, %v98
    %vm102 = vcmask 130048
    %v104 = vsel %vm102, %v89, 0
    %106 = vmatpush.bf16.msra.mxu0 0
    %107 = vmatpush.bf16.msra.mxu0 0
    %108 = vmatpush.bf16.msra.mxu0 0
    %109 = vmatpush.bf16.msra.mxu0 0
    %110 = vmatpush.bf16.msra.mxu0 0
    %111 = vmatpush.bf16.msra.mxu0 0
    %112 = vmatpush.bf16.msra.mxu0 0
    %113 = vmatpush.bf16.msra.mxu0 %v100
    %114 = vmatmul.bf16.gmra.mxu0 %v104
    %v115 = vpop.f32.mrf.mxu0
    %v116 = vadd.f32 %v94, %v115
    %v117 = vpop.f32.mrf.mxu0
    %118 = vdwg.mxu0
    %v119 = vmax.f32 %v116, 0.0
    %v120 = vpack.c.bf16 %v119, %v119
    %v121 = vld [vmem:[#allocation6] sm:$0xf]
    %v122 = vld [vmem:[#allocation6 + $0x4] sm:$0xf]
    %v123 = vld [vmem:[#allocation6 + $0x8] sm:$0xf]
    %v124 = vld [vmem:[#allocation6 + $0xc] sm:$0xf]
    %v125 = vld [vmem:[#allocation6 + $0x10] sm:$0xf]
    %v126 = vld [vmem:[#allocation6 + $0x14] sm:$0xf]
    %v127 = vld [vmem:[#allocation6 + $0x18] sm:$0xf]
    %v128 = vld [vmem:[#allocation6 + $0x1c] sm:$0xf]
    %v129 = vld [vmem:[#allocation6 + $0x20] sm:$0xf]
    %v130 = vld [vmem:[#allocation6 + $0x24] sm:$0xf]
    %v131 = vld [vmem:[#allocation6 + $0x28] sm:$0xf]
    %v132 = vld [vmem:[#allocation6 + $0x2c] sm:$0xf]
    %v133 = vld [vmem:[#allocation6 + $0x30] sm:$0xf]
    %v134 = vld [vmem:[#allocation6 + $0x34] sm:$0xf]
    %v135 = vld [vmem:[#allocation6 + $0x38] sm:$0xf]
    %v136 = vld [vmem:[#allocation6 + $0x3c] sm:$0xf]
    %v137 = vld [vmem:[%s4] sm:$0x1]
    %v139 = vperm.slane %v137, 0
    %v157 = vunpack.c.l.b16 %v121
    %v158 = vunpack.c.l.b16 %v122
    %v159 = vunpack.c.l.b16 %v123
    %v160 = vunpack.c.l.b16 %v124
    %v161 = vunpack.c.l.b16 %v125
    %v162 = vunpack.c.l.b16 %v126
    %v163 = vunpack.c.l.b16 %v127
    %v164 = vunpack.c.l.b16 %v128
    %v165 = vunpack.c.l.b16 %v129
    %v166 = vunpack.c.l.b16 %v130
    %v167 = vunpack.c.l.b16 %v131
    %v168 = vunpack.c.l.b16 %v132
    %v169 = vunpack.c.l.b16 %v133
    %v170 = vunpack.c.l.b16 %v134
    %v171 = vunpack.c.l.b16 %v135
    %v172 = vunpack.c.l.b16 %v136
    %v173 = vpack.c.b16 %v158, %v157
    %v174 = vpack.c.b16 %v160, %v159
    %v175 = vpack.c.b16 %v162, %v161
    %v176 = vpack.c.b16 %v164, %v163
    %v177 = vpack.c.b16 %v166, %v165
    %v178 = vpack.c.b16 %v168, %v167
    %v179 = vpack.c.b16 %v170, %v169
    %v180 = vpack.c.b16 %v172, %v171
    %189 = vmatpush.bf16.msra.mxu0 %v180
    %190 = vmatpush.bf16.msra.mxu0 %v179
    %191 = vmatpush.bf16.msra.mxu0 %v178
    %192 = vmatpush.bf16.msra.mxu0 %v177
    %193 = vmatpush.bf16.msra.mxu0 %v176
    %194 = vmatpush.bf16.msra.mxu0 %v175
    %195 = vmatpush.bf16.msra.mxu0 %v174
    %196 = vmatpush.bf16.msra.mxu0 %v173
    %197 = vmatmul.bf16.gmra.mxu0 %v120
    %v198 = vpop.f32.mrf.mxu0
    %v199 = vadd.f32 %v139, %v198
    %v200 = vpop.f32.mrf.mxu0
    %201 = vdwg.mxu0
    %v202 = vmax.f32 %v199, 0.0
    %v203 = vpack.c.bf16 %v202, %v202
    %v204 = vld [vmem:[#allocation7] sm:$0xf]
    %v205 = vld [vmem:[#allocation7 + $0x4] sm:$0xf]
    %v206 = vld [vmem:[#allocation7 + $0x8] sm:$0xf]
    %v207 = vld [vmem:[#allocation7 + $0xc] sm:$0xf]
    %v208 = vld [vmem:[#allocation7 + $0x10] sm:$0xf]
    %v209 = vld [vmem:[#allocation7 + $0x14] sm:$0xf]
    %v210 = vld [vmem:[#allocation7 + $0x18] sm:$0xf]
    %v211 = vld [vmem:[#allocation7 + $0x1c] sm:$0xf]
    %v212 = vld [vmem:[#allocation7 + $0x20] sm:$0xf]
    %v213 = vld [vmem:[#allocation7 + $0x24] sm:$0xf]
    %v214 = vld [vmem:[#allocation7 + $0x28] sm:$0xf]
    %v215 = vld [vmem:[#allocation7 + $0x2c] sm:$0xf]
    %v216 = vld [vmem:[#allocation7 + $0x30] sm:$0xf]
    %v217 = vld [vmem:[#allocation7 + $0x34] sm:$0xf]
    %v218 = vld [vmem:[#allocation7 + $0x38] sm:$0xf]
    %v219 = vld [vmem:[#allocation7 + $0x3c] sm:$0xf]
    %v220 = vld [vmem:[%s6] sm:$0x1]
    %v222 = vperm.slane %v220, 0
    %v240 = vunpack.c.l.b16 %v204
    %v241 = vunpack.c.l.b16 %v205
    %v242 = vunpack.c.l.b16 %v206
    %v243 = vunpack.c.l.b16 %v207
    %v244 = vunpack.c.l.b16 %v208
    %v245 = vunpack.c.l.b16 %v209
    %v246 = vunpack.c.l.b16 %v210
    %v247 = vunpack.c.l.b16 %v211
    %v248 = vunpack.c.l.b16 %v212
    %v249 = vunpack.c.l.b16 %v213
    %v250 = vunpack.c.l.b16 %v214
    %v251 = vunpack.c.l.b16 %v215
    %v252 = vunpack.c.l.b16 %v216
    %v253 = vunpack.c.l.b16 %v217
    %v254 = vunpack.c.l.b16 %v218
    %v255 = vunpack.c.l.b16 %v219
    %v256 = vpack.c.b16 %v241, %v240
    %v257 = vpack.c.b16 %v243, %v242
    %v258 = vpack.c.b16 %v245, %v244
    %v259 = vpack.c.b16 %v247, %v246
    %v260 = vpack.c.b16 %v249, %v248
    %v261 = vpack.c.b16 %v251, %v250
    %v262 = vpack.c.b16 %v253, %v252
    %v263 = vpack.c.b16 %v255, %v254
    %272 = vmatpush.bf16.msra.mxu0 %v263
    %273 = vmatpush.bf16.msra.mxu0 %v262
    %274 = vmatpush.bf16.msra.mxu0 %v261
    %275 = vmatpush.bf16.msra.mxu0 %v260
    %276 = vmatpush.bf16.msra.mxu0 %v259
    %277 = vmatpush.bf16.msra.mxu0 %v258
    %278 = vmatpush.bf16.msra.mxu0 %v257
    %279 = vmatpush.bf16.msra.mxu0 %v256
    %280 = vmatmul.bf16.gmra.mxu0 %v203
    %v281 = vpop.f32.mrf.mxu0
    %v282 = vadd.f32 %v222, %v281
    %v283 = vpop.f32.mrf.mxu0
    %284 = vdwg.mxu0
    %285 = vmax.xlane.f32.xlu0 %v282
    %v286 = vpop.xlane.xlu0 %285
    %v287 = vsub.f32 %v282, %v286
    %v288 = vmul.f32 %v287, 1.442695
    %v289 = vpow.pop %v288
    %290 = vadd.xlane.f32.xlu0 %v289
    %v291 = vpop.xlane.xlu0 %290
    %v292 = vrcp.pop %v291
    %v293 = vmul.f32 %v291, %v292
    %v294 = vsub.f32 1.0, %v293
    %v295 = vmul.f32 %v292, %v294
    %v296 = vadd.f32 %v292, %v295
    %vm297 = vweird.f32 %v291
    %vm298 = vweird.f32 %v292
    %vm299 = vmor %vm297, %vm298
    %v300 = vsel %vm299, %v292, %v296
    %v301 = vand.u32 2147483647, %v291
    %vm302 = vcmp.eq.f32.partialorder %v301, 8.507059e+37
    %v303 = vand.u32 %v291, 2147483648
    %v304 = vor.u32 1.1754944e-38, %v303
    %v305 = vsel %vm302, %v304, %v300
    %v306 = vmul.f32 %v289, %v305
    %v307 = vpack.c.bf16 %v306, %v306
    %308 = vst [vmem:[%s7] sm:$0xf] %v307
    // Predicated region
    $region46: #{actor_forward.1} parent=1 // pred_check
      _
    $region47: #{actor_forward.1} parent=1 // pred_check_branch
      %310 = sbr.rel (0) target = $region49
    $region48: #{actor_forward.1} parent=1 // pred_region
      _
    $region49: #{actor_forward.1} parent=1 // pred_fallthru
      _
    // Predicated region
    $region50: #{actor_forward.1} parent=1 // pred_check
      _
    $region51: #{actor_forward.1} parent=1 // pred_check_branch
      %312 = sbr.rel (0) target = $region53
    $region52: #{actor_forward.1} parent=1 // pred_region
      _
    $region53: #{actor_forward.1} parent=1 // pred_fallthru
      _
    %313 = vsyncpa [#allocation3], 1
    %314 = vsyncpa [#allocation5], 1
    %315 = vsyncpa [#allocation8], 1

</llo_original>
